<compile_context>
chip_gen: v7x
topology: tpu7x:2x2x1
jax: 0.10.0
libtpu: 0.0.40
codegen_flags: <defaults>
</compile_context>

<pallas_src>
import functools

import jax
import jax.numpy as jnp
from jax import lax
from jax.experimental import pallas as pl
from jax.experimental.pallas import tpu as pltpu

IGNORE_INDEX = 255
GAMMA = 2.0            # module default; squared fast path in-kernel
SMOOTH = 1.0
FOCAL_WEIGHT = 0.5
DICE_WEIGHT = 0.5
# class_weights (FocalLoss.alpha) defaults to None in MixedLoss.__init__,
# so no per-class CE weights are applied (no parameters to initialize).


def _round_up(v, m):
    return -(-v // m) * m


def _mixed_loss_kernel(x_ref, t_ref, out_ref, e_ref, *,
                       num_classes, n_rows, rows_per_tile, ragged, gamma):
    """One (C, S, 128) logits tile + (S, 128) target tile per grid step.

    Packed per-batch-row accumulator rows (lane-dense, 128 wide):
      [0, C)   : per-class dice intersection partial sums
      [C, 2C)  : per-class sum(probs * mask)
      [2C, 3C) : per-class sum(one_hot * mask)
      3C       : focal partial sum
      3C + 1   : valid-pixel count
    """
    C = num_classes

    # Zero this batch-row's resident accumulator block on its first tile.
    @pl.when(pl.program_id(1) == 0)
    def _():
        out_ref[...] = jnp.zeros_like(out_ref)

    t = t_ref[...]                                        # (S, 128) int32
    if ragged:
        # Only emitted when the row tile does not divide HW/128: rows past
        # n_rows in the last tile carry garbage DMA data.
        rows_left = n_rows - pl.program_id(1) * rows_per_tile
        row = lax.broadcasted_iota(jnp.int32, t.shape, 0)
        row_ok = row < rows_left
        t = jnp.where(row_ok, t, IGNORE_INDEX)            # garbage rows -> ignored

    valid = t != IGNORE_INDEX
    tmask = valid.astype(jnp.float32)                     # (S, 128)

    def load_x(c):
        xc = x_ref[c].astype(jnp.float32)                 # (S, 128)
        if ragged:
            # Keep garbage edge logits finite so denom/probs stay NaN-free.
            xc = jnp.where(row_ok, xc, 0.0)
        return xc

    # Per-pixel max over classes: unrolled elementwise chain (VPU only, no XLU).
    m = load_x(0)
    for c in range(1, C):
        m = jnp.maximum(m, load_x(c))

    # exp / denom / x_t, stashing e_c for the per-class probs pass.
    denom = None
    xt = None
    for c in range(C):
        xs = load_x(c) - m
        e = jnp.exp(xs)                                   # EUP
        e_ref[c] = e
        denom = e if denom is None else denom + e
        sel = t == c
        xt = jnp.where(sel, xs, 0.0 if xt is None else xt)

    inv = 1.0 / denom                    # exact divide: keeps 1e-5 parity
    pt = jnp.exp(xt) * inv               # p_t, reused by focal and dice inter
    ce = jnp.log(denom) - xt             # -log p_t
    omp = 1.0 - pt
    if gamma == 2.0:
        focal_factor = omp * omp
    else:                                # generic gamma (not the module default)
        focal_factor = jnp.power(jnp.maximum(omp, 0.0), gamma)
    focal = focal_factor * ce * tmask
    w = inv * tmask                      # shared per-pixel factor for psum_c

    # Lane-dense accumulation (sublane reduce only); full 128-lane rows.
    out_ref[pl.ds(3 * C, 1), :] += jnp.sum(focal, axis=0, keepdims=True)
    out_ref[pl.ds(3 * C + 1, 1), :] += jnp.sum(tmask, axis=0, keepdims=True)
    for c in range(C):
        sel = t == c                     # implies valid: IGNORE_INDEX >= C
        e = e_ref[c]
        out_ref[pl.ds(c, 1), :] += jnp.sum(
            jnp.where(sel, pt, 0.0), axis=0, keepdims=True)          # inter_c
        out_ref[pl.ds(C + c, 1), :] += jnp.sum(
            e * w, axis=0, keepdims=True)                            # psum_c
        out_ref[pl.ds(2 * C + c, 1), :] += jnp.sum(
            sel.astype(jnp.float32), axis=0, keepdims=True)          # ohsum_c


def _pick_rows_tile(n_rows, num_classes, logit_itemsize, budget_bytes):
    """Largest row tile whose (padded, double-buffered) footprint fits budget.

    Accounts for: logits tile x2 buffers, int32 target tile x2 buffers,
    the e^x VMEM scratch, and the packed output block (sublane-padded).
    Prefers an exact divisor of n_rows so no ragged-row mask is emitted.
    """
    C = num_classes
    out_rows = _round_up(3 * C + 2, 8)
    fixed = 2 * out_rows * 128 * 4
    per8 = (2 * C * 8 * 128 * logit_itemsize      # logits tile, double-buffered
            + 2 * 8 * 128 * 4                     # int32 targets, double-buffered
            + C * 8 * 128 * 4)                    # e^x scratch
    cap = max(8, ((budget_bytes - fixed) // per8) * 8)
    if n_rows <= cap:
        return n_rows, False                      # one tile per batch row
    for s in range(cap, 7, -8):                   # exact divisor -> mask-free
        if n_rows % s == 0:
            if 2 * s >= cap:
                return s, False
            break                                 # divisor too small; go ragged
    return cap, True


@functools.partial(jax.jit,
                   static_argnames=("rows_tile", "vmem_budget_bytes", "gamma"))
def mixed_loss(logits, targets, rows_tile=None, vmem_budget_bytes=None,
               gamma=GAMMA):
    """logits: (N, C, H, W) float32/bfloat16, targets: (N, H, W) int -> scalar."""
    N, C, H, W = logits.shape
    HW = H * W
    assert C <= IGNORE_INDEX, "class index must not collide with ignore_index"

    if targets.dtype != jnp.int32:
        # TODO(synk): cast targets to int32 at the producer to avoid this pass.
        targets = targets.astype(jnp.int32)

    x = logits.reshape(N, C, HW)                  # free contiguous reshape
    t = targets.reshape(N, HW)

    hw_pad = _round_up(HW, 128)
    if hw_pad != HW:
        # Uncommon path (H*W not a multiple of 128): one pad pass; padded
        # targets are IGNORE_INDEX so they drop out of every reduction.
        x = jnp.pad(x, ((0, 0), (0, 0), (0, hw_pad - HW)))
        t = jnp.pad(t, ((0, 0), (0, hw_pad - HW)), constant_values=IGNORE_INDEX)

    R = hw_pad // 128
    x4 = x.reshape(N, C, R, 128)                  # free contiguous reshape
    t3 = t.reshape(N, R, 128)

    budget = (16 << 20) if vmem_budget_bytes is None else int(vmem_budget_bytes)
    if rows_tile is None:
        S, ragged = _pick_rows_tile(R, C, x4.dtype.itemsize, budget)
    else:
        S = min(int(rows_tile), R)
        if S < R and S % 8 != 0:
            S = max(8, (S // 8) * 8)
        S = min(S, R)
        ragged = (R % S) != 0
    n_tiles = pl.cdiv(R, S)
    RP = 3 * C + 2

    kernel = functools.partial(
        _mixed_loss_kernel, num_classes=C, n_rows=R, rows_per_tile=S,
        ragged=ragged, gamma=gamma)

    packed = pl.pallas_call(
        kernel,
        out_shape=jax.ShapeDtypeStruct((N, RP, 128), jnp.float32),
        grid_spec=pltpu.PrefetchScalarGridSpec(
            num_scalar_prefetch=0,
            grid=(N, n_tiles),
            in_specs=[
                pl.BlockSpec((None, C, S, 128), lambda n, i: (n, 0, i, 0)),
                pl.BlockSpec((None, S, 128), lambda n, i: (n, i, 0)),
            ],
            out_specs=pl.BlockSpec((None, RP, 128), lambda n, i: (n, 0, 0)),
            scratch_shapes=[pltpu.VMEM((C, S, 128), jnp.float32)],
        ),
        compiler_params=pltpu.CompilerParams(
            dimension_semantics=("parallel", "arbitrary"),
            vmem_limit_bytes=min(96 << 20, max(32 << 20, budget + (16 << 20))),
        ),
    )(x4, t3)

    # Tiny final reduction + combination in plain JAX (item 4: wrapper-side
    # lane/batch reduce of the lane-dense packed accumulators).
    sums = jnp.sum(packed, axis=(0, 2))           # (3C+2,)
    inter = sums[:C]
    psum = sums[C:2 * C]
    ohsum = sums[2 * C:3 * C]
    focal_sum = sums[3 * C]
    cnt = sums[3 * C + 1]

    focal_loss = jnp.where(cnt > 0, focal_sum / jnp.maximum(cnt, 1.0), 0.0)
    dice_per_class = (2.0 * inter + SMOOTH) / (psum + ohsum + SMOOTH)
    dice_loss = 1.0 - jnp.mean(dice_per_class)
    return FOCAL_WEIGHT * focal_loss + DICE_WEIGHT * dice_loss


def _mixed_loss_ref(logits, targets):
    """Pure-JAX reference mirroring the PyTorch MixedLoss forward."""
    N, C, H, W = logits.shape
    probs = jax.nn.softmax(logits, axis=1)
    log_probs = jax.nn.log_softmax(logits, axis=1)
    valid = targets != IGNORE_INDEX
    mask = valid.astype(jnp.float32)
    safe_t = jnp.where(valid, targets, 0)
    one_hot = jax.nn.one_hot(safe_t, C, dtype=jnp.float32)        # (N,H,W,C)
    one_hot = jnp.transpose(one_hot, (0, 3, 1, 2))                # (N,C,H,W)
    # focal
    ce = -jnp.sum(log_probs * one_hot, axis=1)                    # (N,H,W)
    pt = jnp.exp(-ce)
    focal = ((1.0 - pt) ** GAMMA) * ce * mask
    focal_loss = jnp.where(mask.sum() > 0, focal.sum() / mask.sum(), 0.0)
    # dice
    m4 = mask[:, None]
    inter = jnp.sum(probs * one_hot * m4, axis=(0, 2, 3))
    union = (jnp.sum(probs * m4, axis=(0, 2, 3))
             + jnp.sum(one_hot * m4, axis=(0, 2, 3)))
    dice = 1.0 - jnp.mean((2.0 * inter + SMOOTH) / (union + SMOOTH))
    return FOCAL_WEIGHT * focal_loss + DICE_WEIGHT * dice


if __name__ == "__main__":
    key = jax.random.PRNGKey(0)
    keys = jax.random.split(key, 9)

    # 1) Module-sized inputs (N=2, C=4, 16x16): HW=256 -> 2 dense 128-lane
    #    rows, one tile per batch row, no masking code emitted at all.
    N, C, H, W = 2, 4, 16, 16
    logits = jax.random.normal(keys[0], (N, C, H, W), dtype=jnp.float32)
    targets = jax.random.randint(keys[1], (N, H, W), 0, C, dtype=jnp.int32)
    targets = jnp.where(jax.random.uniform(keys[2], (N, H, W)) < 0.1,
                        IGNORE_INDEX, targets)
    loss = jax.block_until_ready(mixed_loss(logits, targets))
    ref = _mixed_loss_ref(logits, targets)
    assert jnp.allclose(loss, ref, atol=1e-5, rtol=1e-5), (loss, ref)

    # 2) Odd H*W (18x18 = 324): exercises the wrapper pad-to-128 path.
    H2, W2 = 18, 18
    logits2 = jax.random.normal(keys[3], (N, C, H2, W2), dtype=jnp.float32)
    targets2 = jax.random.randint(keys[4], (N, H2, W2), 0, C, dtype=jnp.int32)
    targets2 = jnp.where(jax.random.uniform(keys[5], (N, H2, W2)) < 0.1,
                         IGNORE_INDEX, targets2)
    loss2 = jax.block_until_ready(mixed_loss(logits2, targets2))
    ref2 = _mixed_loss_ref(logits2, targets2)
    assert jnp.allclose(loss2, ref2, atol=1e-5, rtol=1e-5), (loss2, ref2)

    # 3) Multi-tile with a ragged last row tile (48x48 -> 18 rows, rows_tile=8):
    #    exercises the static ragged-row mask path.
    H3, W3 = 48, 48
    logits3 = jax.random.normal(keys[6], (N, C, H3, W3), dtype=jnp.float32)
    targets3 = jax.random.randint(keys[7], (N, H3, W3), 0, C, dtype=jnp.int32)
    targets3 = jnp.where(jax.random.uniform(keys[8], (N, H3, W3)) < 0.1,
                         IGNORE_INDEX, targets3)
    loss3 = jax.block_until_ready(mixed_loss(logits3, targets3, rows_tile=8))
    ref3 = _mixed_loss_ref(logits3, targets3)
    assert jnp.allclose(loss3, ref3, atol=1e-5, rtol=1e-5), (loss3, ref3)

    print("KERNEL_OK")
</pallas_src>

<mosaic_0001>
module attributes {stable_mosaic.version = 11 : i64} {
  func.func @_mixed_loss_kernel(%arg0: i32, %arg1: i32, %arg2: memref<1x4x2x128xf32, #tpu.memory_space<vmem>>, %arg3: memref<1x2x128xi32, #tpu.memory_space<vmem>>, %arg4: memref<1x14x128xf32, #tpu.memory_space<vmem>>, %arg5: memref<4x2x128xf32, #tpu.memory_space<vmem>>) attributes {dimension_semantics = [#tpu.dimension_semantics<parallel>, #tpu.dimension_semantics<arbitrary>], iteration_bounds = array<i64: 2, 1>, scalar_prefetch = 0 : i64, scratch_operands = 1 : i64, tpu.core_type = #tpu.core_type<tc>, window_params = [{transform_indices = @transform_0, window_bounds = array<i64: 1, 4, 2, 128>}, {transform_indices = @transform_1, window_bounds = array<i64: 1, 2, 128>}, {transform_indices = @transform_2, window_bounds = array<i64: 1, 14, 128>}]} {
    %c0_i32 = arith.constant 0 : i32
    %0 = arith.cmpi eq, %arg1, %c0_i32 : i32
    %1 = arith.extui %0 : i1 to i32
    %c0_i32_0 = arith.constant 0 : i32
    %2 = arith.cmpi ne, %1, %c0_i32_0 : i32
    scf.if %2 {
      %cst_155 = arith.constant 0.000000e+00 : f32
      %224 = vector.broadcast %cst_155 : f32 to vector<14x128xf32>
      %c0_156 = arith.constant 0 : index
      %c0_157 = arith.constant 0 : index
      %c0_158 = arith.constant 0 : index
      %225 = vector.load %arg4[%c0_156, %c0_157, %c0_158] : memref<1x14x128xf32, #tpu.memory_space<vmem>>, vector<1x14x128xf32>
      %226 = vector.shape_cast %225 : vector<1x14x128xf32> to vector<14x128xf32>
      %227 = vector.shape_cast %224 : vector<14x128xf32> to vector<1x14x128xf32>
      tpu.vector_store %arg4[%c0_156, %c0_157, %c0_158], %227 {strides = array<i32>} : memref<1x14x128xf32, #tpu.memory_space<vmem>>, vector<1x14x128xf32>,
    } else {
    }
    %c0 = arith.constant 0 : index
    %c0_1 = arith.constant 0 : index
    %c0_2 = arith.constant 0 : index
    %3 = vector.load %arg3[%c0, %c0_1, %c0_2] : memref<1x2x128xi32, #tpu.memory_space<vmem>>, vector<1x2x128xi32>
    %4 = vector.shape_cast %3 : vector<1x2x128xi32> to vector<2x128xi32>
    %c255_i32 = arith.constant 255 : i32
    %5 = vector.broadcast %c255_i32 : i32 to vector<2x128xi32>
    %6 = arith.cmpi ne, %4, %5 : vector<2x128xi32>
    %7 = arith.extui %6 : vector<2x128xi1> to vector<2x128xi32>
    %8 = arith.sitofp %7 : vector<2x128xi32> to vector<2x128xf32>
    %c0_3 = arith.constant 0 : index
    %c0_4 = arith.constant 0 : index
    %c0_5 = arith.constant 0 : index
    %c0_6 = arith.constant 0 : index
    %9 = vector.load %arg2[%c0_3, %c0_4, %c0_5, %c0_6] : memref<1x4x2x128xf32, #tpu.memory_space<vmem>>, vector<1x1x2x128xf32>
    %10 = vector.shape_cast %9 : vector<1x1x2x128xf32> to vector<2x128xf32>
    %c0_7 = arith.constant 0 : index
    %c1 = arith.constant 1 : index
    %c0_8 = arith.constant 0 : index
    %c0_9 = arith.constant 0 : index
    %11 = vector.load %arg2[%c0_7, %c1, %c0_8, %c0_9] : memref<1x4x2x128xf32, #tpu.memory_space<vmem>>, vector<1x1x2x128xf32>
    %12 = vector.shape_cast %11 : vector<1x1x2x128xf32> to vector<2x128xf32>
    %13 = arith.maximumf %10, %12 : vector<2x128xf32>
    %c0_10 = arith.constant 0 : index
    %c2 = arith.constant 2 : index
    %c0_11 = arith.constant 0 : index
    %c0_12 = arith.constant 0 : index
    %14 = vector.load %arg2[%c0_10, %c2, %c0_11, %c0_12] : memref<1x4x2x128xf32, #tpu.memory_space<vmem>>, vector<1x1x2x128xf32>
    %15 = vector.shape_cast %14 : vector<1x1x2x128xf32> to vector<2x128xf32>
    %16 = arith.maximumf %13, %15 : vector<2x128xf32>
    %c0_13 = arith.constant 0 : index
    %c3 = arith.constant 3 : index
    %c0_14 = arith.constant 0 : index
    %c0_15 = arith.constant 0 : index
    %17 = vector.load %arg2[%c0_13, %c3, %c0_14, %c0_15] : memref<1x4x2x128xf32, #tpu.memory_space<vmem>>, vector<1x1x2x128xf32>
    %18 = vector.shape_cast %17 : vector<1x1x2x128xf32> to vector<2x128xf32>
    %19 = arith.maximumf %16, %18 : vector<2x128xf32>
    %c0_16 = arith.constant 0 : index
    %c0_17 = arith.constant 0 : index
    %c0_18 = arith.constant 0 : index
    %c0_19 = arith.constant 0 : index
    %20 = vector.load %arg2[%c0_16, %c0_17, %c0_18, %c0_19] : memref<1x4x2x128xf32, #tpu.memory_space<vmem>>, vector<1x1x2x128xf32>
    %21 = vector.shape_cast %20 : vector<1x1x2x128xf32> to vector<2x128xf32>
    %22 = arith.subf %21, %19 : vector<2x128xf32>
    %23 = math.exp %22 : vector<2x128xf32>
    %c0_20 = arith.constant 0 : index
    %c0_21 = arith.constant 0 : index
    %c0_22 = arith.constant 0 : index
    %24 = vector.load %arg5[%c0_20, %c0_21, %c0_22] : memref<4x2x128xf32, #tpu.memory_space<vmem>>, vector<1x2x128xf32>
    %25 = vector.shape_cast %24 : vector<1x2x128xf32> to vector<2x128xf32>
    %26 = vector.shape_cast %23 : vector<2x128xf32> to vector<1x2x128xf32>
    tpu.vector_store %arg5[%c0_20, %c0_21, %c0_22], %26 {strides = array<i32>} : memref<4x2x128xf32, #tpu.memory_space<vmem>>, vector<1x2x128xf32>,
    %c0_i32_23 = arith.constant 0 : i32
    %27 = vector.broadcast %c0_i32_23 : i32 to vector<2x128xi32>
    %28 = arith.cmpi eq, %4, %27 : vector<2x128xi32>
    %cst = arith.constant 0.000000e+00 : f32
    %29 = vector.broadcast %cst : f32 to vector<2x128xf32>
    %30 = arith.select %28, %22, %29 : vector<2x128xi1>, vector<2x128xf32>
    %c0_24 = arith.constant 0 : index
    %c1_25 = arith.constant 1 : index
    %c0_26 = arith.constant 0 : index
    %c0_27 = arith.constant 0 : index
    %31 = vector.load %arg2[%c0_24, %c1_25, %c0_26, %c0_27] : memref<1x4x2x128xf32, #tpu.memory_space<vmem>>, vector<1x1x2x128xf32>
    %32 = vector.shape_cast %31 : vector<1x1x2x128xf32> to vector<2x128xf32>
    %33 = arith.subf %32, %19 : vector<2x128xf32>
    %34 = math.exp %33 : vector<2x128xf32>
    %c1_28 = arith.constant 1 : index
    %c0_29 = arith.constant 0 : index
    %c0_30 = arith.constant 0 : index
    %35 = vector.load %arg5[%c1_28, %c0_29, %c0_30] : memref<4x2x128xf32, #tpu.memory_space<vmem>>, vector<1x2x128xf32>
    %36 = vector.shape_cast %35 : vector<1x2x128xf32> to vector<2x128xf32>
    %37 = vector.shape_cast %34 : vector<2x128xf32> to vector<1x2x128xf32>
    tpu.vector_store %arg5[%c1_28, %c0_29, %c0_30], %37 {strides = array<i32>} : memref<4x2x128xf32, #tpu.memory_space<vmem>>, vector<1x2x128xf32>,
    %38 = arith.addf %23, %34 : vector<2x128xf32>
    %c1_i32 = arith.constant 1 : i32
    %39 = vector.broadcast %c1_i32 : i32 to vector<2x128xi32>
    %40 = arith.cmpi eq, %4, %39 : vector<2x128xi32>
    %41 = arith.select %40, %33, %30 : vector<2x128xi1>, vector<2x128xf32>
    %c0_31 = arith.constant 0 : index
    %c2_32 = arith.constant 2 : index
    %c0_33 = arith.constant 0 : index
    %c0_34 = arith.constant 0 : index
    %42 = vector.load %arg2[%c0_31, %c2_32, %c0_33, %c0_34] : memref<1x4x2x128xf32, #tpu.memory_space<vmem>>, vector<1x1x2x128xf32>
    %43 = vector.shape_cast %42 : vector<1x1x2x128xf32> to vector<2x128xf32>
    %44 = arith.subf %43, %19 : vector<2x128xf32>
    %45 = math.exp %44 : vector<2x128xf32>
    %c2_35 = arith.constant 2 : index
    %c0_36 = arith.constant 0 : index
    %c0_37 = arith.constant 0 : index
    %46 = vector.load %arg5[%c2_35, %c0_36, %c0_37] : memref<4x2x128xf32, #tpu.memory_space<vmem>>, vector<1x2x128xf32>
    %47 = vector.shape_cast %46 : vector<1x2x128xf32> to vector<2x128xf32>
    %48 = vector.shape_cast %45 : vector<2x128xf32> to vector<1x2x128xf32>
    tpu.vector_store %arg5[%c2_35, %c0_36, %c0_37], %48 {strides = array<i32>} : memref<4x2x128xf32, #tpu.memory_space<vmem>>, vector<1x2x128xf32>,
    %49 = arith.addf %38, %45 : vector<2x128xf32>
    %c2_i32 = arith.constant 2 : i32
    %50 = vector.broadcast %c2_i32 : i32 to vector<2x128xi32>
    %51 = arith.cmpi eq, %4, %50 : vector<2x128xi32>
    %52 = arith.select %51, %44, %41 : vector<2x128xi1>, vector<2x128xf32>
    %c0_38 = arith.constant 0 : index
    %c3_39 = arith.constant 3 : index
    %c0_40 = arith.constant 0 : index
    %c0_41 = arith.constant 0 : index
    %53 = vector.load %arg2[%c0_38, %c3_39, %c0_40, %c0_41] : memref<1x4x2x128xf32, #tpu.memory_space<vmem>>, vector<1x1x2x128xf32>
    %54 = vector.shape_cast %53 : vector<1x1x2x128xf32> to vector<2x128xf32>
    %55 = arith.subf %54, %19 : vector<2x128xf32>
    %56 = math.exp %55 : vector<2x128xf32>
    %c3_42 = arith.constant 3 : index
    %c0_43 = arith.constant 0 : index
    %c0_44 = arith.constant 0 : index
    %57 = vector.load %arg5[%c3_42, %c0_43, %c0_44] : memref<4x2x128xf32, #tpu.memory_space<vmem>>, vector<1x2x128xf32>
    %58 = vector.shape_cast %57 : vector<1x2x128xf32> to vector<2x128xf32>
    %59 = vector.shape_cast %56 : vector<2x128xf32> to vector<1x2x128xf32>
    tpu.vector_store %arg5[%c3_42, %c0_43, %c0_44], %59 {strides = array<i32>} : memref<4x2x128xf32, #tpu.memory_space<vmem>>, vector<1x2x128xf32>,
    %60 = arith.addf %49, %56 : vector<2x128xf32>
    %c3_i32 = arith.constant 3 : i32
    %61 = vector.broadcast %c3_i32 : i32 to vector<2x128xi32>
    %62 = arith.cmpi eq, %4, %61 : vector<2x128xi32>
    %63 = arith.select %62, %55, %52 : vector<2x128xi1>, vector<2x128xf32>
    %cst_45 = arith.constant 1.000000e+00 : f32
    %64 = vector.broadcast %cst_45 : f32 to vector<2x128xf32>
    %65 = arith.divf %64, %60 : vector<2x128xf32>
    %66 = math.exp %63 : vector<2x128xf32>
    %67 = arith.mulf %66, %65 : vector<2x128xf32>
    %68 = math.log %60 : vector<2x128xf32>
    %69 = arith.subf %68, %63 : vector<2x128xf32>
    %cst_46 = arith.constant 1.000000e+00 : f32
    %70 = vector.broadcast %cst_46 : f32 to vector<2x128xf32>
    %71 = arith.subf %70, %67 : vector<2x128xf32>
    %72 = arith.mulf %71, %71 : vector<2x128xf32>
    %73 = arith.mulf %72, %69 : vector<2x128xf32>
    %74 = arith.mulf %73, %8 : vector<2x128xf32>
    %75 = arith.mulf %65, %8 : vector<2x128xf32>
    %c0_47 = arith.constant 0 : index
    %c12 = arith.constant 12 : index
    %c0_48 = arith.constant 0 : index
    %76 = vector.load %arg4[%c0_47, %c12, %c0_48] : memref<1x14x128xf32, #tpu.memory_space<vmem>>, vector<1x1x128xf32>
    %77 = vector.shape_cast %76 : vector<1x1x128xf32> to vector<1x128xf32>
    %cst_49 = arith.constant dense<0.000000e+00> : vector<128xf32>
    %78 = vector.multi_reduction <add>, %74, %cst_49 [0] : vector<2x128xf32> to vector<128xf32>
    %79 = vector.shape_cast %78 : vector<128xf32> to vector<1x128xf32>
    %80 = arith.addf %77, %79 : vector<1x128xf32>
    %c0_50 = arith.constant 0 : index
    %c12_51 = arith.constant 12 : index
    %c0_52 = arith.constant 0 : index
    %81 = vector.load %arg4[%c0_50, %c12_51, %c0_52] : memref<1x14x128xf32, #tpu.memory_space<vmem>>, vector<1x1x128xf32>
    %82 = vector.shape_cast %81 : vector<1x1x128xf32> to vector<1x128xf32>
    %83 = vector.shape_cast %80 : vector<1x128xf32> to vector<1x1x128xf32>
    tpu.vector_store %arg4[%c0_50, %c12_51, %c0_52], %83 {strides = array<i32>} : memref<1x14x128xf32, #tpu.memory_space<vmem>>, vector<1x1x128xf32>,
    %c0_53 = arith.constant 0 : index
    %c13 = arith.constant 13 : index
    %c0_54 = arith.constant 0 : index
    %84 = vector.load %arg4[%c0_53, %c13, %c0_54] : memref<1x14x128xf32, #tpu.memory_space<vmem>>, vector<1x1x128xf32>
    %85 = vector.shape_cast %84 : vector<1x1x128xf32> to vector<1x128xf32>
    %cst_55 = arith.constant dense<0.000000e+00> : vector<128xf32>
    %86 = vector.multi_reduction <add>, %8, %cst_55 [0] : vector<2x128xf32> to vector<128xf32>
    %87 = vector.shape_cast %86 : vector<128xf32> to vector<1x128xf32>
    %88 = arith.addf %85, %87 : vector<1x128xf32>
    %c0_56 = arith.constant 0 : index
    %c13_57 = arith.constant 13 : index
    %c0_58 = arith.constant 0 : index
    %89 = vector.load %arg4[%c0_56, %c13_57, %c0_58] : memref<1x14x128xf32, #tpu.memory_space<vmem>>, vector<1x1x128xf32>
    %90 = vector.shape_cast %89 : vector<1x1x128xf32> to vector<1x128xf32>
    %91 = vector.shape_cast %88 : vector<1x128xf32> to vector<1x1x128xf32>
    tpu.vector_store %arg4[%c0_56, %c13_57, %c0_58], %91 {strides = array<i32>} : memref<1x14x128xf32, #tpu.memory_space<vmem>>, vector<1x1x128xf32>,
    %c0_i32_59 = arith.constant 0 : i32
    %92 = vector.broadcast %c0_i32_59 : i32 to vector<2x128xi32>
    %93 = arith.cmpi eq, %4, %92 : vector<2x128xi32>
    %c0_60 = arith.constant 0 : index
    %c0_61 = arith.constant 0 : index
    %c0_62 = arith.constant 0 : index
    %94 = vector.load %arg5[%c0_60, %c0_61, %c0_62] : memref<4x2x128xf32, #tpu.memory_space<vmem>>, vector<1x2x128xf32>
    %95 = vector.shape_cast %94 : vector<1x2x128xf32> to vector<2x128xf32>
    %c0_63 = arith.constant 0 : index
    %c0_64 = arith.constant 0 : index
    %c0_65 = arith.constant 0 : index
    %96 = vector.load %arg4[%c0_63, %c0_64, %c0_65] : memref<1x14x128xf32, #tpu.memory_space<vmem>>, vector<1x1x128xf32>
    %97 = vector.shape_cast %96 : vector<1x1x128xf32> to vector<1x128xf32>
    %cst_66 = arith.constant 0.000000e+00 : f32
    %98 = vector.broadcast %cst_66 : f32 to vector<2x128xf32>
    %99 = arith.select %93, %67, %98 : vector<2x128xi1>, vector<2x128xf32>
    %cst_67 = arith.constant dense<0.000000e+00> : vector<128xf32>
    %100 = vector.multi_reduction <add>, %99, %cst_67 [0] : vector<2x128xf32> to vector<128xf32>
    %101 = vector.shape_cast %100 : vector<128xf32> to vector<1x128xf32>
    %102 = arith.addf %97, %101 : vector<1x128xf32>
    %c0_68 = arith.constant 0 : index
    %c0_69 = arith.constant 0 : index
    %c0_70 = arith.constant 0 : index
    %103 = vector.load %arg4[%c0_68, %c0_69, %c0_70] : memref<1x14x128xf32, #tpu.memory_space<vmem>>, vector<1x1x128xf32>
    %104 = vector.shape_cast %103 : vector<1x1x128xf32> to vector<1x128xf32>
    %105 = vector.shape_cast %102 : vector<1x128xf32> to vector<1x1x128xf32>
    tpu.vector_store %arg4[%c0_68, %c0_69, %c0_70], %105 {strides = array<i32>} : memref<1x14x128xf32, #tpu.memory_space<vmem>>, vector<1x1x128xf32>,
    %c0_71 = arith.constant 0 : index
    %c4 = arith.constant 4 : index
    %c0_72 = arith.constant 0 : index
    %106 = vector.load %arg4[%c0_71, %c4, %c0_72] : memref<1x14x128xf32, #tpu.memory_space<vmem>>, vector<1x1x128xf32>
    %107 = vector.shape_cast %106 : vector<1x1x128xf32> to vector<1x128xf32>
    %108 = arith.mulf %95, %75 : vector<2x128xf32>
    %cst_73 = arith.constant dense<0.000000e+00> : vector<128xf32>
    %109 = vector.multi_reduction <add>, %108, %cst_73 [0] : vector<2x128xf32> to vector<128xf32>
    %110 = vector.shape_cast %109 : vector<128xf32> to vector<1x128xf32>
    %111 = arith.addf %107, %110 : vector<1x128xf32>
    %c0_74 = arith.constant 0 : index
    %c4_75 = arith.constant 4 : index
    %c0_76 = arith.constant 0 : index
    %112 = vector.load %arg4[%c0_74, %c4_75, %c0_76] : memref<1x14x128xf32, #tpu.memory_space<vmem>>, vector<1x1x128xf32>
    %113 = vector.shape_cast %112 : vector<1x1x128xf32> to vector<1x128xf32>
    %114 = vector.shape_cast %111 : vector<1x128xf32> to vector<1x1x128xf32>
    tpu.vector_store %arg4[%c0_74, %c4_75, %c0_76], %114 {strides = array<i32>} : memref<1x14x128xf32, #tpu.memory_space<vmem>>, vector<1x1x128xf32>,
    %c0_77 = arith.constant 0 : index
    %c8 = arith.constant 8 : index
    %c0_78 = arith.constant 0 : index
    %115 = vector.load %arg4[%c0_77, %c8, %c0_78] : memref<1x14x128xf32, #tpu.memory_space<vmem>>, vector<1x1x128xf32>
    %116 = vector.shape_cast %115 : vector<1x1x128xf32> to vector<1x128xf32>
    %117 = arith.extui %93 : vector<2x128xi1> to vector<2x128xi32>
    %118 = arith.sitofp %117 : vector<2x128xi32> to vector<2x128xf32>
    %cst_79 = arith.constant dense<0.000000e+00> : vector<128xf32>
    %119 = vector.multi_reduction <add>, %118, %cst_79 [0] : vector<2x128xf32> to vector<128xf32>
    %120 = vector.shape_cast %119 : vector<128xf32> to vector<1x128xf32>
    %121 = arith.addf %116, %120 : vector<1x128xf32>
    %c0_80 = arith.constant 0 : index
    %c8_81 = arith.constant 8 : index
    %c0_82 = arith.constant 0 : index
    %122 = vector.load %arg4[%c0_80, %c8_81, %c0_82] : memref<1x14x128xf32, #tpu.memory_space<vmem>>, vector<1x1x128xf32>
    %123 = vector.shape_cast %122 : vector<1x1x128xf32> to vector<1x128xf32>
    %124 = vector.shape_cast %121 : vector<1x128xf32> to vector<1x1x128xf32>
    tpu.vector_store %arg4[%c0_80, %c8_81, %c0_82], %124 {strides = array<i32>} : memref<1x14x128xf32, #tpu.memory_space<vmem>>, vector<1x1x128xf32>,
    %c1_i32_83 = arith.constant 1 : i32
    %125 = vector.broadcast %c1_i32_83 : i32 to vector<2x128xi32>
    %126 = arith.cmpi eq, %4, %125 : vector<2x128xi32>
    %c1_84 = arith.constant 1 : index
    %c0_85 = arith.constant 0 : index
    %c0_86 = arith.constant 0 : index
    %127 = vector.load %arg5[%c1_84, %c0_85, %c0_86] : memref<4x2x128xf32, #tpu.memory_space<vmem>>, vector<1x2x128xf32>
    %128 = vector.shape_cast %127 : vector<1x2x128xf32> to vector<2x128xf32>
    %c0_87 = arith.constant 0 : index
    %c1_88 = arith.constant 1 : index
    %c0_89 = arith.constant 0 : index
    %129 = vector.load %arg4[%c0_87, %c1_88, %c0_89] : memref<1x14x128xf32, #tpu.memory_space<vmem>>, vector<1x1x128xf32>
    %130 = vector.shape_cast %129 : vector<1x1x128xf32> to vector<1x128xf32>
    %cst_90 = arith.constant 0.000000e+00 : f32
    %131 = vector.broadcast %cst_90 : f32 to vector<2x128xf32>
    %132 = arith.select %126, %67, %131 : vector<2x128xi1>, vector<2x128xf32>
    %cst_91 = arith.constant dense<0.000000e+00> : vector<128xf32>
    %133 = vector.multi_reduction <add>, %132, %cst_91 [0] : vector<2x128xf32> to vector<128xf32>
    %134 = vector.shape_cast %133 : vector<128xf32> to vector<1x128xf32>
    %135 = arith.addf %130, %134 : vector<1x128xf32>
    %c0_92 = arith.constant 0 : index
    %c1_93 = arith.constant 1 : index
    %c0_94 = arith.constant 0 : index
    %136 = vector.load %arg4[%c0_92, %c1_93, %c0_94] : memref<1x14x128xf32, #tpu.memory_space<vmem>>, vector<1x1x128xf32>
    %137 = vector.shape_cast %136 : vector<1x1x128xf32> to vector<1x128xf32>
    %138 = vector.shape_cast %135 : vector<1x128xf32> to vector<1x1x128xf32>
    tpu.vector_store %arg4[%c0_92, %c1_93, %c0_94], %138 {strides = array<i32>} : memref<1x14x128xf32, #tpu.memory_space<vmem>>, vector<1x1x128xf32>,
    %c0_95 = arith.constant 0 : index
    %c5 = arith.constant 5 : index
    %c0_96 = arith.constant 0 : index
    %139 = vector.load %arg4[%c0_95, %c5, %c0_96] : memref<1x14x128xf32, #tpu.memory_space<vmem>>, vector<1x1x128xf32>
    %140 = vector.shape_cast %139 : vector<1x1x128xf32> to vector<1x128xf32>
    %141 = arith.mulf %128, %75 : vector<2x128xf32>
    %cst_97 = arith.constant dense<0.000000e+00> : vector<128xf32>
    %142 = vector.multi_reduction <add>, %141, %cst_97 [0] : vector<2x128xf32> to vector<128xf32>
    %143 = vector.shape_cast %142 : vector<128xf32> to vector<1x128xf32>
    %144 = arith.addf %140, %143 : vector<1x128xf32>
    %c0_98 = arith.constant 0 : index
    %c5_99 = arith.constant 5 : index
    %c0_100 = arith.constant 0 : index
    %145 = vector.load %arg4[%c0_98, %c5_99, %c0_100] : memref<1x14x128xf32, #tpu.memory_space<vmem>>, vector<1x1x128xf32>
    %146 = vector.shape_cast %145 : vector<1x1x128xf32> to vector<1x128xf32>
    %147 = vector.shape_cast %144 : vector<1x128xf32> to vector<1x1x128xf32>
    tpu.vector_store %arg4[%c0_98, %c5_99, %c0_100], %147 {strides = array<i32>} : memref<1x14x128xf32, #tpu.memory_space<vmem>>, vector<1x1x128xf32>,
    %c0_101 = arith.constant 0 : index
    %c9 = arith.constant 9 : index
    %c0_102 = arith.constant 0 : index
    %148 = vector.load %arg4[%c0_101, %c9, %c0_102] : memref<1x14x128xf32, #tpu.memory_space<vmem>>, vector<1x1x128xf32>
    %149 = vector.shape_cast %148 : vector<1x1x128xf32> to vector<1x128xf32>
    %150 = arith.extui %126 : vector<2x128xi1> to vector<2x128xi32>
    %151 = arith.sitofp %150 : vector<2x128xi32> to vector<2x128xf32>
    %cst_103 = arith.constant dense<0.000000e+00> : vector<128xf32>
    %152 = vector.multi_reduction <add>, %151, %cst_103 [0] : vector<2x128xf32> to vector<128xf32>
    %153 = vector.shape_cast %152 : vector<128xf32> to vector<1x128xf32>
    %154 = arith.addf %149, %153 : vector<1x128xf32>
    %c0_104 = arith.constant 0 : index
    %c9_105 = arith.constant 9 : index
    %c0_106 = arith.constant 0 : index
    %155 = vector.load %arg4[%c0_104, %c9_105, %c0_106] : memref<1x14x128xf32, #tpu.memory_space<vmem>>, vector<1x1x128xf32>
    %156 = vector.shape_cast %155 : vector<1x1x128xf32> to vector<1x128xf32>
    %157 = vector.shape_cast %154 : vector<1x128xf32> to vector<1x1x128xf32>
    tpu.vector_store %arg4[%c0_104, %c9_105, %c0_106], %157 {strides = array<i32>} : memref<1x14x128xf32, #tpu.memory_space<vmem>>, vector<1x1x128xf32>,
    %c2_i32_107 = arith.constant 2 : i32
    %158 = vector.broadcast %c2_i32_107 : i32 to vector<2x128xi32>
    %159 = arith.cmpi eq, %4, %158 : vector<2x128xi32>
    %c2_108 = arith.constant 2 : index
    %c0_109 = arith.constant 0 : index
    %c0_110 = arith.constant 0 : index
    %160 = vector.load %arg5[%c2_108, %c0_109, %c0_110] : memref<4x2x128xf32, #tpu.memory_space<vmem>>, vector<1x2x128xf32>
    %161 = vector.shape_cast %160 : vector<1x2x128xf32> to vector<2x128xf32>
    %c0_111 = arith.constant 0 : index
    %c2_112 = arith.constant 2 : index
    %c0_113 = arith.constant 0 : index
    %162 = vector.load %arg4[%c0_111, %c2_112, %c0_113] : memref<1x14x128xf32, #tpu.memory_space<vmem>>, vector<1x1x128xf32>
    %163 = vector.shape_cast %162 : vector<1x1x128xf32> to vector<1x128xf32>
    %cst_114 = arith.constant 0.000000e+00 : f32
    %164 = vector.broadcast %cst_114 : f32 to vector<2x128xf32>
    %165 = arith.select %159, %67, %164 : vector<2x128xi1>, vector<2x128xf32>
    %cst_115 = arith.constant dense<0.000000e+00> : vector<128xf32>
    %166 = vector.multi_reduction <add>, %165, %cst_115 [0] : vector<2x128xf32> to vector<128xf32>
    %167 = vector.shape_cast %166 : vector<128xf32> to vector<1x128xf32>
    %168 = arith.addf %163, %167 : vector<1x128xf32>
    %c0_116 = arith.constant 0 : index
    %c2_117 = arith.constant 2 : index
    %c0_118 = arith.constant 0 : index
    %169 = vector.load %arg4[%c0_116, %c2_117, %c0_118] : memref<1x14x128xf32, #tpu.memory_space<vmem>>, vector<1x1x128xf32>
    %170 = vector.shape_cast %169 : vector<1x1x128xf32> to vector<1x128xf32>
    %171 = vector.shape_cast %168 : vector<1x128xf32> to vector<1x1x128xf32>
    tpu.vector_store %arg4[%c0_116, %c2_117, %c0_118], %171 {strides = array<i32>} : memref<1x14x128xf32, #tpu.memory_space<vmem>>, vector<1x1x128xf32>,
    %c0_119 = arith.constant 0 : index
    %c6 = arith.constant 6 : index
    %c0_120 = arith.constant 0 : index
    %172 = vector.load %arg4[%c0_119, %c6, %c0_120] : memref<1x14x128xf32, #tpu.memory_space<vmem>>, vector<1x1x128xf32>
    %173 = vector.shape_cast %172 : vector<1x1x128xf32> to vector<1x128xf32>
    %174 = arith.mulf %161, %75 : vector<2x128xf32>
    %cst_121 = arith.constant dense<0.000000e+00> : vector<128xf32>
    %175 = vector.multi_reduction <add>, %174, %cst_121 [0] : vector<2x128xf32> to vector<128xf32>
    %176 = vector.shape_cast %175 : vector<128xf32> to vector<1x128xf32>
    %177 = arith.addf %173, %176 : vector<1x128xf32>
    %c0_122 = arith.constant 0 : index
    %c6_123 = arith.constant 6 : index
    %c0_124 = arith.constant 0 : index
    %178 = vector.load %arg4[%c0_122, %c6_123, %c0_124] : memref<1x14x128xf32, #tpu.memory_space<vmem>>, vector<1x1x128xf32>
    %179 = vector.shape_cast %178 : vector<1x1x128xf32> to vector<1x128xf32>
    %180 = vector.shape_cast %177 : vector<1x128xf32> to vector<1x1x128xf32>
    tpu.vector_store %arg4[%c0_122, %c6_123, %c0_124], %180 {strides = array<i32>} : memref<1x14x128xf32, #tpu.memory_space<vmem>>, vector<1x1x128xf32>,
    %c0_125 = arith.constant 0 : index
    %c10 = arith.constant 10 : index
    %c0_126 = arith.constant 0 : index
    %181 = vector.load %arg4[%c0_125, %c10, %c0_126] : memref<1x14x128xf32, #tpu.memory_space<vmem>>, vector<1x1x128xf32>
    %182 = vector.shape_cast %181 : vector<1x1x128xf32> to vector<1x128xf32>
    %183 = arith.extui %159 : vector<2x128xi1> to vector<2x128xi32>
    %184 = arith.sitofp %183 : vector<2x128xi32> to vector<2x128xf32>
    %cst_127 = arith.constant dense<0.000000e+00> : vector<128xf32>
    %185 = vector.multi_reduction <add>, %184, %cst_127 [0] : vector<2x128xf32> to vector<128xf32>
    %186 = vector.shape_cast %185 : vector<128xf32> to vector<1x128xf32>
    %187 = arith.addf %182, %186 : vector<1x128xf32>
    %c0_128 = arith.constant 0 : index
    %c10_129 = arith.constant 10 : index
    %c0_130 = arith.constant 0 : index
    %188 = vector.load %arg4[%c0_128, %c10_129, %c0_130] : memref<1x14x128xf32, #tpu.memory_space<vmem>>, vector<1x1x128xf32>
    %189 = vector.shape_cast %188 : vector<1x1x128xf32> to vector<1x128xf32>
    %190 = vector.shape_cast %187 : vector<1x128xf32> to vector<1x1x128xf32>
    tpu.vector_store %arg4[%c0_128, %c10_129, %c0_130], %190 {strides = array<i32>} : memref<1x14x128xf32, #tpu.memory_space<vmem>>, vector<1x1x128xf32>,
    %c3_i32_131 = arith.constant 3 : i32
    %191 = vector.broadcast %c3_i32_131 : i32 to vector<2x128xi32>
    %192 = arith.cmpi eq, %4, %191 : vector<2x128xi32>
    %c3_132 = arith.constant 3 : index
    %c0_133 = arith.constant 0 : index
    %c0_134 = arith.constant 0 : index
    %193 = vector.load %arg5[%c3_132, %c0_133, %c0_134] : memref<4x2x128xf32, #tpu.memory_space<vmem>>, vector<1x2x128xf32>
    %194 = vector.shape_cast %193 : vector<1x2x128xf32> to vector<2x128xf32>
    %c0_135 = arith.constant 0 : index
    %c3_136 = arith.constant 3 : index
    %c0_137 = arith.constant 0 : index
    %195 = vector.load %arg4[%c0_135, %c3_136, %c0_137] : memref<1x14x128xf32, #tpu.memory_space<vmem>>, vector<1x1x128xf32>
    %196 = vector.shape_cast %195 : vector<1x1x128xf32> to vector<1x128xf32>
    %cst_138 = arith.constant 0.000000e+00 : f32
    %197 = vector.broadcast %cst_138 : f32 to vector<2x128xf32>
    %198 = arith.select %192, %67, %197 : vector<2x128xi1>, vector<2x128xf32>
    %cst_139 = arith.constant dense<0.000000e+00> : vector<128xf32>
    %199 = vector.multi_reduction <add>, %198, %cst_139 [0] : vector<2x128xf32> to vector<128xf32>
    %200 = vector.shape_cast %199 : vector<128xf32> to vector<1x128xf32>
    %201 = arith.addf %196, %200 : vector<1x128xf32>
    %c0_140 = arith.constant 0 : index
    %c3_141 = arith.constant 3 : index
    %c0_142 = arith.constant 0 : index
    %202 = vector.load %arg4[%c0_140, %c3_141, %c0_142] : memref<1x14x128xf32, #tpu.memory_space<vmem>>, vector<1x1x128xf32>
    %203 = vector.shape_cast %202 : vector<1x1x128xf32> to vector<1x128xf32>
    %204 = vector.shape_cast %201 : vector<1x128xf32> to vector<1x1x128xf32>
    tpu.vector_store %arg4[%c0_140, %c3_141, %c0_142], %204 {strides = array<i32>} : memref<1x14x128xf32, #tpu.memory_space<vmem>>, vector<1x1x128xf32>,
    %c0_143 = arith.constant 0 : index
    %c7 = arith.constant 7 : index
    %c0_144 = arith.constant 0 : index
    %205 = vector.load %arg4[%c0_143, %c7, %c0_144] : memref<1x14x128xf32, #tpu.memory_space<vmem>>, vector<1x1x128xf32>
    %206 = vector.shape_cast %205 : vector<1x1x128xf32> to vector<1x128xf32>
    %207 = arith.mulf %194, %75 : vector<2x128xf32>
    %cst_145 = arith.constant dense<0.000000e+00> : vector<128xf32>
    %208 = vector.multi_reduction <add>, %207, %cst_145 [0] : vector<2x128xf32> to vector<128xf32>
    %209 = vector.shape_cast %208 : vector<128xf32> to vector<1x128xf32>
    %210 = arith.addf %206, %209 : vector<1x128xf32>
    %c0_146 = arith.constant 0 : index
    %c7_147 = arith.constant 7 : index
    %c0_148 = arith.constant 0 : index
    %211 = vector.load %arg4[%c0_146, %c7_147, %c0_148] : memref<1x14x128xf32, #tpu.memory_space<vmem>>, vector<1x1x128xf32>
    %212 = vector.shape_cast %211 : vector<1x1x128xf32> to vector<1x128xf32>
    %213 = vector.shape_cast %210 : vector<1x128xf32> to vector<1x1x128xf32>
    tpu.vector_store %arg4[%c0_146, %c7_147, %c0_148], %213 {strides = array<i32>} : memref<1x14x128xf32, #tpu.memory_space<vmem>>, vector<1x1x128xf32>,
    %c0_149 = arith.constant 0 : index
    %c11 = arith.constant 11 : index
    %c0_150 = arith.constant 0 : index
    %214 = vector.load %arg4[%c0_149, %c11, %c0_150] : memref<1x14x128xf32, #tpu.memory_space<vmem>>, vector<1x1x128xf32>
    %215 = vector.shape_cast %214 : vector<1x1x128xf32> to vector<1x128xf32>
    %216 = arith.extui %192 : vector<2x128xi1> to vector<2x128xi32>
    %217 = arith.sitofp %216 : vector<2x128xi32> to vector<2x128xf32>
    %cst_151 = arith.constant dense<0.000000e+00> : vector<128xf32>
    %218 = vector.multi_reduction <add>, %217, %cst_151 [0] : vector<2x128xf32> to vector<128xf32>
    %219 = vector.shape_cast %218 : vector<128xf32> to vector<1x128xf32>
    %220 = arith.addf %215, %219 : vector<1x128xf32>
    %c0_152 = arith.constant 0 : index
    %c11_153 = arith.constant 11 : index
    %c0_154 = arith.constant 0 : index
    %221 = vector.load %arg4[%c0_152, %c11_153, %c0_154] : memref<1x14x128xf32, #tpu.memory_space<vmem>>, vector<1x1x128xf32>
    %222 = vector.shape_cast %221 : vector<1x1x128xf32> to vector<1x128xf32>
    %223 = vector.shape_cast %220 : vector<1x128xf32> to vector<1x1x128xf32>
    tpu.vector_store %arg4[%c0_152, %c11_153, %c0_154], %223 {strides = array<i32>} : memref<1x14x128xf32, #tpu.memory_space<vmem>>, vector<1x1x128xf32>,
    return
  }
  func.func @transform_0(%arg0: i32, %arg1: i32) -> (i32, i32, i32, i32) {
    %c0_i32 = arith.constant 0 : i32
    %c0_i32_0 = arith.constant 0 : i32
    %c0_i32_1 = arith.constant 0 : i32
    return %arg0, %c0_i32, %arg1, %c0_i32_0 : i32, i32, i32, i32
  }
  func.func @transform_1(%arg0: i32, %arg1: i32) -> (i32, i32, i32) {
    %c0_i32 = arith.constant 0 : i32
    %c0_i32_0 = arith.constant 0 : i32
    return %arg0, %arg1, %c0_i32 : i32, i32, i32
  }
  func.func @transform_2(%arg0: i32, %arg1: i32) -> (i32, i32, i32) {
    %c0_i32 = arith.constant 0 : i32
    %c0_i32_0 = arith.constant 0 : i32
    %c0_i32_1 = arith.constant 0 : i32
    return %arg0, %c0_i32, %c0_i32_0 : i32, i32, i32
  }
}

</mosaic_0001>

<llo_original>
// kernel: mixed_loss.1
$region0: #{mixed_loss.1}
  #allocation0 [shape = 'u32[]', space=smem, size = 0x4, offset = 0x4, fixed_abs, tag = 'smem constant byte address 0x4 - core index']
  #allocation1 [shape = 'u32[144,128]{1,0:T(1,128)}', space=vmem, size = 0x12000, scoped, tag = 'internal scratch']
  #allocation2 [shape = 'f32[4,2,128]{2,1,0:T(2,128)}', space=vmem, size = 0x1000, scoped, tag = 'scratch operand']
  %s0 = inlined_call_operand.vmem [shape: f32[2,4,2,128], index: 0, kind: input, shape index: {}]
  %s1 = inlined_call_operand.vmem [shape: s32[2,2,128], index: 1, kind: input, shape index: {}]
  %s2 = inlined_call_operand.vmem [shape: f32[2,14,128], index: 2, kind: output, shape index: {}]
  %s3 = sld [smem:[#allocation0]]
  $region45: #{mixed_loss.1} parent=0
    _
  %s5 = ssub.s32 1, %s3
  %s6 = scalar_select 0, %s5, %s3
  loop: start=0, step=1, limit=4
  $region2: #{mixed_loss.1} parent=0 // loop_pre_header
    _
  $region3: #{mixed_loss.1} parent=0 // loop_header
    %s8 = sphi 0, %s12
    %p9 = scmp.ge.s32.totalorder %s8, 4
    %s15 = sphi 0, %s27
    %s16 = sphi 0, %s23
    %s17 = sphi 0, %s15
    %s18 = sphi 0, %s16
    %s19 = sphi 0, %s17
    %s20 = sphi 0, %s18
    %s32 = sphi 0, %s34
    %s35 = sphi 0, %s32
    %s36 = sphi 0, %s35
    %s52 = sphi 0, %s36
    %s60 = sphi 0, %s62
    %s63 = sphi 0, %s60
    %s64 = sphi 0, %s63
    %s80 = sphi 0, %s64
    %s86 = sphi 0, %s88
    %s89 = sphi 0, %s86
    %s90 = sphi 0, %s89
    %s106 = sphi 0, %s90
  $region4: #{mixed_loss.1} parent=0 // loop_header_branch
    %11 = sbr.rel (%p9) target = $region8
  $region5: #{mixed_loss.1} parent=0 // loop_body
    %s13 = ssub.s32 %s8, 1
    %s14 = ssub.s32 %s8, 2
    %s21 = sadd.s32 1, %s16
    %p22 = scmp.ge.s32.totalorder %s21, 1
    %s23 = scalar_select %p22, 0, %s21
    %s24 = sadd.s32 1, %s15
    %s25 = scalar_select %p22, %s24, %s15
    %p26 = scmp.ge.s32.totalorder %s25, 2
    %s27 = scalar_select %p26, 0, %s25
    %s28 = ssub.s32 %s15, %s27
    %s29 = ssub.s32 %s16, %s23
    %s30 = sor.u32 %s28, %s29
    %p31 = scmp.eq.s32.totalorder %s30, 0
    %s33 = sadd.s32 %s32, 1
    %s34 = scalar_select %p31, %s32, %s33
    %p37 = pneg %p31
    %p38 = scmp.eq.s32.totalorder %s8, 1
    %p39 = por %p37, %p38
    %p40 = scmp.ne.s32.totalorder %s32, %s35
    %p41 = scmp.eq.s32.totalorder %s8, 0
    %p42 = por %p40, %p41
    %p43 = scmp.ne.s32.totalorder %s32, %s35
    %p44 = scmp.eq.s32.totalorder %s13, 1
    %p45 = por %p43, %p44
    %p46 = scmp.ne.s32.totalorder %s35, %s36
    %p47 = scmp.eq.s32.totalorder %s13, 0
    %p48 = por %p46, %p47
    %p49 = scmp.ne.s32.totalorder %s35, %s36
    %p50 = scmp.eq.s32.totalorder %s14, 1
    %p51 = por %p49, %p50
    %p53 = scmp.ne.s32.totalorder %s36, %s52
    %p54 = scmp.eq.s32.totalorder %s14, 0
    %p55 = por %p53, %p54
    %s56 = ssub.s32 %s15, %s27
    %s57 = ssub.s32 %s16, %s23
    %s58 = sor.u32 %s56, %s57
    %p59 = scmp.eq.s32.totalorder %s58, 0
    %s61 = sadd.s32 %s60, 1
    %s62 = scalar_select %p59, %s60, %s61
    %p65 = pneg %p59
    %p66 = scmp.eq.s32.totalorder %s8, 1
    %p67 = por %p65, %p66
    %p68 = scmp.ne.s32.totalorder %s60, %s63
    %p69 = scmp.eq.s32.totalorder %s8, 0
    %p70 = por %p68, %p69
    %p71 = scmp.ne.s32.totalorder %s60, %s63
    %p72 = scmp.eq.s32.totalorder %s13, 1
    %p73 = por %p71, %p72
    %p74 = scmp.ne.s32.totalorder %s63, %s64
    %p75 = scmp.eq.s32.totalorder %s13, 0
    %p76 = por %p74, %p75
    %p77 = scmp.ne.s32.totalorder %s63, %s64
    %p78 = scmp.eq.s32.totalorder %s14, 1
    %p79 = por %p77, %p78
    %p81 = scmp.ne.s32.totalorder %s64, %s80
    %p82 = scmp.eq.s32.totalorder %s14, 0
    %p83 = por %p81, %p82
    %s84 = ssub.s32 %s15, %s27
    %p85 = scmp.eq.s32.totalorder %s84, 0
    %s87 = sadd.s32 %s86, 1
    %s88 = scalar_select %p85, %s86, %s87
    %p91 = pneg %p85
    %p92 = scmp.eq.s32.totalorder %s8, 1
    %p93 = por %p91, %p92
    %p94 = scmp.ne.s32.totalorder %s86, %s89
    %p95 = scmp.eq.s32.totalorder %s8, 0
    %p96 = por %p94, %p95
    %p97 = scmp.ne.s32.totalorder %s86, %s89
    %p98 = scmp.eq.s32.totalorder %s13, 1
    %p99 = por %p97, %p98
    %p100 = scmp.ne.s32.totalorder %s89, %s90
    %p101 = scmp.eq.s32.totalorder %s13, 0
    %p102 = por %p100, %p101
    %p103 = scmp.ne.s32.totalorder %s89, %s90
    %p104 = scmp.eq.s32.totalorder %s14, 1
    %p105 = por %p103, %p104
    %p107 = scmp.ne.s32.totalorder %s90, %s106
    %p108 = scmp.eq.s32.totalorder %s14, 0
    %p109 = por %p107, %p108
    %p110 = scmp.le.s32.totalorder 1, %s8
    %p111 = scmp.lt.s32.totalorder %s8, 3
    %p112 = pnand %p110, %p111
    %p113 = pneg %p112
    // Predicated region
    $region9: #{mixed_loss.1} parent=5 // pred_check
      _
    $region10: #{mixed_loss.1} parent=5 // pred_check_branch
      %115 = sbr.rel (%p112) target = $region12
    $region11: #{mixed_loss.1} parent=5 // pred_region
      %s116 = ssub.s32 %s8, 1
    $region12: #{mixed_loss.1} parent=5 // pred_fallthru
      _
    %p117 = scmp.lt.s32.totalorder %s8, 2
    // Predicated region
    $region13: #{mixed_loss.1} parent=5 // pred_check
      %p118 = pneg %p117
    $region14: #{mixed_loss.1} parent=5 // pred_check_branch
      %120 = sbr.rel (%p118) target = $region16
    $region15: #{mixed_loss.1} parent=5 // pred_region
      // Predicated region
      $region17: #{mixed_loss.1} parent=15 // pred_check
        %p121 = pneg %p42
      $region18: #{mixed_loss.1} parent=15 // pred_check_branch
        %123 = sbr.rel (%p121) target = $region20
      $region19: #{mixed_loss.1} parent=15 // pred_region
        %p124 = scmp.lt.s32.totalorder %s15, 1
        %s125 = scalar_select %p124, %s15, 1
        %p126 = scmp.lt.s32.totalorder %s16, 0
        %s127 = scalar_select %p126, %s16, 0
        %s128 = smul.addr %s125, 4
        %s129 = sadd.s32 %s127, %s128
        %s130 = smul.addr %s129, 2
        %s131 = scalar_lea.vmem %s0, %s130
      $region20: #{mixed_loss.1} parent=15 // pred_fallthru
        _
      // Predicated region
      $region21: #{mixed_loss.1} parent=15 // pred_check
        %p132 = pneg %p70
      $region22: #{mixed_loss.1} parent=15 // pred_check_branch
        %134 = sbr.rel (%p132) target = $region24
      $region23: #{mixed_loss.1} parent=15 // pred_region
        %p135 = scmp.lt.s32.totalorder %s15, 1
        %s136 = scalar_select %p135, %s15, 1
        %p137 = scmp.lt.s32.totalorder %s16, 0
        %s138 = scalar_select %p137, %s16, 0
        %s139 = sadd.s32 %s138, %s136
        %s140 = smul.addr %s139, 2
        %s141 = scalar_lea.vmem %s1, %s140
      $region24: #{mixed_loss.1} parent=15 // pred_fallthru
        _
    $region16: #{mixed_loss.1} parent=5 // pred_fallthru
      _
    %p142 = scmp.le.s32.totalorder 1, %s8
    %p143 = scmp.lt.s32.totalorder %s8, 3
    %p144 = pnand %p142, %p143
    %p145 = pneg %p144
    // Predicated region
    $region25: #{mixed_loss.1} parent=5 // pred_check
      _
    $region26: #{mixed_loss.1} parent=5 // pred_check_branch
      %147 = sbr.rel (%p144) target = $region28
    $region27: #{mixed_loss.1} parent=5 // pred_region
      %s148 = ssub.s32 %s8, 1
      %p149 = scmp.lt.s32.totalorder %s17, 1
      %s150 = scalar_select %p149, %s17, 1
      %p151 = scmp.lt.s32.totalorder %s18, 0
      %s152 = scalar_select %p151, %s18, 0
      %s153 = smul.addr %s150, 4
      %s154 = sadd.s32 %s152, %s153
      %s155 = smul.addr %s154, 2
      %s156 = scalar_lea.vmem %s0, %s155
      %p157 = pneg %p48
      %p158 = pneg %p45
      %p159 = scmp.lt.s32.totalorder %s17, 1
      %s160 = scalar_select %p159, %s17, 1
      %p161 = scmp.lt.s32.totalorder %s18, 0
      %s162 = scalar_select %p161, %s18, 0
      %s163 = sadd.s32 %s162, %s160
      %s164 = smul.addr %s163, 2
      %s165 = scalar_lea.vmem %s1, %s164
      %p166 = pneg %p76
      %p167 = pneg %p73
      %p168 = pneg %p102
      %p169 = pneg %p99
      %p170 = scmp.lt.s32.totalorder %s17, 1
      %s171 = scalar_select %p170, %s17, 1
      %s172 = smul.addr %s171, 2
      %s173 = smul.addr %s172, 8
      %s174 = scalar_lea.vmem %s2, %s173
      %p175 = scmp.lt.s32.totalorder %s17, 1
      %s176 = scalar_select %p175, %s17, 1
      %p177 = scmp.lt.s32.totalorder %s18, 0
      %s178 = scalar_select %p177, %s18, 0
      %s179 = smul.addr %s176, 4
      %s180 = sadd.s32 %s178, %s179
      %s181 = smul.addr %s180, 2
      %s182 = scalar_lea.vmem %s0, %s181
      %p183 = scmp.lt.s32.totalorder %s17, 1
      %s184 = scalar_select %p183, %s17, 1
      %p185 = scmp.lt.s32.totalorder %s18, 0
      %s186 = scalar_select %p185, %s18, 0
      %s187 = sadd.s32 %s186, %s184
      %s188 = smul.addr %s187, 2
      %s189 = scalar_lea.vmem %s1, %s188
      %p190 = scmp.lt.s32.totalorder %s17, 1
      %s191 = scalar_select %p190, %s17, 1
      %s192 = smul.addr %s191, 2
      %s193 = smul.addr %s192, 8
      %s194 = scalar_lea.vmem %s2, %s193
      %p195 = scmp.eq.s32.totalorder %s18, 0
      // Predicated region
      $region29: #{mixed_loss.1} parent=27 // pred_check
        %p196 = pneg %p195
      $region30: #{mixed_loss.1} parent=27 // pred_check_branch
        %198 = sbr.rel (%p196) target = $region32
      $region31: #{mixed_loss.1} parent=27 // pred_region
        %199 = vst [vmem:[%s194] sm:$0xff] 0.0
        %200 = vst [vmem:[%s194 + $0x8] sm:$0x3f] 0.0
      $region32: #{mixed_loss.1} parent=27 // pred_fallthru
        _
      %v201 = vld [vmem:[%s189] sm:$0x3]
      %vm202 = vcmp.ne.s32.totalorder %v201, 255
      %v203 = vsel %vm202, 1, 0
      %v204 = vcvt.s32.f32 %v203
      %v205 = vld [vmem:[%s182] sm:$0x3]
      %s206 = scalar_lea.vmem %s182, 2
      %v207 = vld [vmem:[%s206] sm:$0x3]
      %v208 = vmax.f32 %v205, %v207
      %s209 = scalar_lea.vmem %s182, 4
      %v210 = vld [vmem:[%s209] sm:$0x3]
      %v211 = vmax.f32 %v208, %v210
      %s212 = scalar_lea.vmem %s182, 6
      %v213 = vld [vmem:[%s212] sm:$0x3]
      %v214 = vmax.f32 %v211, %v213
      %v215 = vsub.f32 %v205, %v214
      %v216 = vmul.f32 %v215, 1.442695
      %v217 = vpow.pop %v216
      %218 = vst [vmem:[#allocation2] sm:$0x3] %v217
      %vm219 = vcmp.eq.s32.totalorder %v201, 0
      %v220 = vsel %vm219, %v215, 0.0
      %v221 = vld [vmem:[%s206] sm:$0x3]
      %v222 = vsub.f32 %v221, %v214
      %v223 = vmul.f32 %v222, 1.442695
      %v224 = vpow.pop %v223
      %s225 = scalar_lea.vmem [#allocation2], 2
      %226 = vst [vmem:[%s225] sm:$0x3] %v224
      %v227 = vadd.f32 %v217, %v224
      %vm228 = vcmp.eq.s32.totalorder %v201, 1
      %v229 = vsel %vm228, %v222, %v220
      %v230 = vld [vmem:[%s209] sm:$0x3]
      %v231 = vsub.f32 %v230, %v214
      %v232 = vmul.f32 %v231, 1.442695
      %v233 = vpow.pop %v232
      %s234 = scalar_lea.vmem [#allocation2], 4
      %235 = vst [vmem:[%s234] sm:$0x3] %v233
      %v236 = vadd.f32 %v227, %v233
      %vm237 = vcmp.eq.s32.totalorder %v201, 2
      %v238 = vsel %vm237, %v231, %v229
      %v239 = vld [vmem:[%s212] sm:$0x3]
      %v240 = vsub.f32 %v239, %v214
      %v241 = vmul.f32 %v240, 1.442695
      %v242 = vpow.pop %v241
      %s243 = scalar_lea.vmem [#allocation2], 6
      %244 = vst [vmem:[%s243] sm:$0x3] %v242
      %v245 = vadd.f32 %v236, %v242
      %vm246 = vcmp.eq.s32.totalorder %v201, 3
      %v247 = vsel %vm246, %v240, %v238
      %v248 = vrcp.pop %v245
      %v249 = vmul.f32 1.0, %v248
      %v250 = vmul.f32 %v247, 1.442695
      %v251 = vpow.pop %v250
      %v252 = vmul.f32 %v251, %v249
      %v253 = vlog2.pop %v245
      %v254 = vmul.f32 %v253, 0.6931472
      %v255 = vsub.f32 %v254, %v247
      %v256 = vsub.f32 1.0, %v252
      %v257 = vmul.f32 %v256, %v256
      %v258 = vmul.f32 %v257, %v255
      %v259 = vmul.f32 %v258, %v204
      %v260 = vmul.f32 %v249, %v204
      %v261 = vld [vmem:[%s194 + $0xc] sm:$0x1]
      %vm262 = vcmask 1041408
      %v263 = vsel %vm262, %v259, 0.0
      %v264 = vrot.slane %v263, 4
      %v265 = vadd.f32 %v263, %v264
      %v266 = vrot.slane %v265, 2
      %v267 = vadd.f32 %v265, %v266
      %v268 = vrot.slane %v267, 1
      %v269 = vadd.f32 %v267, %v268
      %v270 = vadd.f32 %v261, %v269
      %271 = vst [vmem:[%s194 + $0xc] sm:$0x1] %v270
      %v272 = vld [vmem:[%s194 + $0xd] sm:$0x1]
      %v273 = vsel %vm262, %v204, 0.0
      %v274 = vrot.slane %v273, 4
      %v275 = vadd.f32 %v273, %v274
      %v276 = vrot.slane %v275, 2
      %v277 = vadd.f32 %v275, %v276
      %v278 = vrot.slane %v277, 1
      %v279 = vadd.f32 %v277, %v278
      %v280 = vadd.f32 %v272, %v279
      %281 = vst [vmem:[%s194 + $0xd] sm:$0x1] %v280
      %v282 = vld [vmem:[#allocation2] sm:$0x3]
      %v283 = vld [vmem:[%s194] sm:$0x1]
      %v284 = vsel %vm219, %v252, 0.0
      %v285 = vsel %vm262, %v284, 0.0
      %v286 = vrot.slane %v285, 4
      %v287 = vadd.f32 %v285, %v286
      %v288 = vrot.slane %v287, 2
      %v289 = vadd.f32 %v287, %v288
      %v290 = vrot.slane %v289, 1
      %v291 = vadd.f32 %v289, %v290
      %v292 = vadd.f32 %v283, %v291
      %293 = vst [vmem:[%s194] sm:$0x1] %v292
      %v294 = vld [vmem:[%s194 + $0x4] sm:$0x1]
      %v295 = vmul.f32 %v282, %v260
      %v296 = vsel %vm262, %v295, 0.0
      %v297 = vrot.slane %v296, 4
      %v298 = vadd.f32 %v296, %v297
      %v299 = vrot.slane %v298, 2
      %v300 = vadd.f32 %v298, %v299
      %v301 = vrot.slane %v300, 1
      %v302 = vadd.f32 %v300, %v301
      %v303 = vadd.f32 %v294, %v302
      %304 = vst [vmem:[%s194 + $0x4] sm:$0x1] %v303
      %v305 = vld [vmem:[%s194 + $0x8] sm:$0x1]
      %v306 = vsel %vm219, 1, 0
      %v307 = vcvt.s32.f32 %v306
      %v308 = vsel %vm262, %v307, 0.0
      %v309 = vrot.slane %v308, 4
      %v310 = vadd.f32 %v308, %v309
      %v311 = vrot.slane %v310, 2
      %v312 = vadd.f32 %v310, %v311
      %v313 = vrot.slane %v312, 1
      %v314 = vadd.f32 %v312, %v313
      %v315 = vadd.f32 %v305, %v314
      %316 = vst [vmem:[%s194 + $0x8] sm:$0x1] %v315
      %v317 = vld [vmem:[%s225] sm:$0x3]
      %v318 = vld [vmem:[%s194 + $0x1] sm:$0x1]
      %v319 = vsel %vm228, %v252, 0.0
      %v320 = vsel %vm262, %v319, 0.0
      %v321 = vrot.slane %v320, 4
      %v322 = vadd.f32 %v320, %v321
      %v323 = vrot.slane %v322, 2
      %v324 = vadd.f32 %v322, %v323
      %v325 = vrot.slane %v324, 1
      %v326 = vadd.f32 %v324, %v325
      %v327 = vadd.f32 %v318, %v326
      %328 = vst [vmem:[%s194 + $0x1] sm:$0x1] %v327
      %v329 = vld [vmem:[%s194 + $0x5] sm:$0x1]
      %v330 = vmul.f32 %v317, %v260
      %v331 = vsel %vm262, %v330, 0.0
      %v332 = vrot.slane %v331, 4
      %v333 = vadd.f32 %v331, %v332
      %v334 = vrot.slane %v333, 2
      %v335 = vadd.f32 %v333, %v334
      %v336 = vrot.slane %v335, 1
      %v337 = vadd.f32 %v335, %v336
      %v338 = vadd.f32 %v329, %v337
      %339 = vst [vmem:[%s194 + $0x5] sm:$0x1] %v338
      %v340 = vld [vmem:[%s194 + $0x9] sm:$0x1]
      %v341 = vsel %vm228, 1, 0
      %v342 = vcvt.s32.f32 %v341
      %v343 = vsel %vm262, %v342, 0.0
      %v344 = vrot.slane %v343, 4
      %v345 = vadd.f32 %v343, %v344
      %v346 = vrot.slane %v345, 2
      %v347 = vadd.f32 %v345, %v346
      %v348 = vrot.slane %v347, 1
      %v349 = vadd.f32 %v347, %v348
      %v350 = vadd.f32 %v340, %v349
      %351 = vst [vmem:[%s194 + $0x9] sm:$0x1] %v350
      %v352 = vld [vmem:[%s234] sm:$0x3]
      %v353 = vld [vmem:[%s194 + $0x2] sm:$0x1]
      %v354 = vsel %vm237, %v252, 0.0
      %v355 = vsel %vm262, %v354, 0.0
      %v356 = vrot.slane %v355, 4
      %v357 = vadd.f32 %v355, %v356
      %v358 = vrot.slane %v357, 2
      %v359 = vadd.f32 %v357, %v358
      %v360 = vrot.slane %v359, 1
      %v361 = vadd.f32 %v359, %v360
      %v362 = vadd.f32 %v353, %v361
      %363 = vst [vmem:[%s194 + $0x2] sm:$0x1] %v362
      %v364 = vld [vmem:[%s194 + $0x6] sm:$0x1]
      %v365 = vmul.f32 %v352, %v260
      %v366 = vsel %vm262, %v365, 0.0
      %v367 = vrot.slane %v366, 4
      %v368 = vadd.f32 %v366, %v367
      %v369 = vrot.slane %v368, 2
      %v370 = vadd.f32 %v368, %v369
      %v371 = vrot.slane %v370, 1
      %v372 = vadd.f32 %v370, %v371
      %v373 = vadd.f32 %v364, %v372
      %374 = vst [vmem:[%s194 + $0x6] sm:$0x1] %v373
      %v375 = vld [vmem:[%s194 + $0xa] sm:$0x1]
      %v376 = vsel %vm237, 1, 0
      %v377 = vcvt.s32.f32 %v376
      %v378 = vsel %vm262, %v377, 0.0
      %v379 = vrot.slane %v378, 4
      %v380 = vadd.f32 %v378, %v379
      %v381 = vrot.slane %v380, 2
      %v382 = vadd.f32 %v380, %v381
      %v383 = vrot.slane %v382, 1
      %v384 = vadd.f32 %v382, %v383
      %v385 = vadd.f32 %v375, %v384
      %386 = vst [vmem:[%s194 + $0xa] sm:$0x1] %v385
      %v387 = vld [vmem:[%s243] sm:$0x3]
      %v388 = vld [vmem:[%s194 + $0x3] sm:$0x1]
      %v389 = vsel %vm246, %v252, 0.0
      %v390 = vsel %vm262, %v389, 0.0
      %v391 = vrot.slane %v390, 4
      %v392 = vadd.f32 %v390, %v391
      %v393 = vrot.slane %v392, 2
      %v394 = vadd.f32 %v392, %v393
      %v395 = vrot.slane %v394, 1
      %v396 = vadd.f32 %v394, %v395
      %v397 = vadd.f32 %v388, %v396
      %398 = vst [vmem:[%s194 + $0x3] sm:$0x1] %v397
      %v399 = vld [vmem:[%s194 + $0x7] sm:$0x1]
      %v400 = vmul.f32 %v387, %v260
      %v401 = vsel %vm262, %v400, 0.0
      %v402 = vrot.slane %v401, 4
      %v403 = vadd.f32 %v401, %v402
      %v404 = vrot.slane %v403, 2
      %v405 = vadd.f32 %v403, %v404
      %v406 = vrot.slane %v405, 1
      %v407 = vadd.f32 %v405, %v406
      %v408 = vadd.f32 %v399, %v407
      %409 = vst [vmem:[%s194 + $0x7] sm:$0x1] %v408
      %v410 = vld [vmem:[%s194 + $0xb] sm:$0x1]
      %v411 = vsel %vm246, 1, 0
      %v412 = vcvt.s32.f32 %v411
      %v413 = vsel %vm262, %v412, 0.0
      %v414 = vrot.slane %v413, 4
      %v415 = vadd.f32 %v413, %v414
      %v416 = vrot.slane %v415, 2
      %v417 = vadd.f32 %v415, %v416
      %v418 = vrot.slane %v417, 1
      %v419 = vadd.f32 %v417, %v418
      %v420 = vadd.f32 %v410, %v419
      %421 = vst [vmem:[%s194 + $0xb] sm:$0x1] %v420
      %p422 = scmp.lt.s32.totalorder %s17, 1
      %s423 = scalar_select %p422, %s17, 1
      %s424 = smul.addr %s423, 2
      %s425 = smul.addr %s424, 8
      %s426 = scalar_lea.vmem %s2, %s425
      // Predicated region
      $region33: #{mixed_loss.1} parent=27 // pred_check
        %p427 = pneg %p99
      $region34: #{mixed_loss.1} parent=27 // pred_check_branch
        %429 = sbr.rel (%p427) target = $region36
      $region35: #{mixed_loss.1} parent=27 // pred_region
        _
      $region36: #{mixed_loss.1} parent=27 // pred_fallthru
        _
    $region28: #{mixed_loss.1} parent=5 // pred_fallthru
      _
    %p430 = scmp.le.s32.totalorder 2, %s8
    // Predicated region
    $region37: #{mixed_loss.1} parent=5 // pred_check
      %p431 = pneg %p430
    $region38: #{mixed_loss.1} parent=5 // pred_check_branch
      %433 = sbr.rel (%p431) target = $region40
    $region39: #{mixed_loss.1} parent=5 // pred_region
      %s434 = ssub.s32 %s8, 2
      // Predicated region
      $region41: #{mixed_loss.1} parent=39 // pred_check
        %p435 = pneg %p105
      $region42: #{mixed_loss.1} parent=39 // pred_check_branch
        %437 = sbr.rel (%p435) target = $region44
      $region43: #{mixed_loss.1} parent=39 // pred_region
        %p438 = scmp.lt.s32.totalorder %s19, 1
        %s439 = scalar_select %p438, %s19, 1
        %s440 = smul.addr %s439, 2
        %s441 = smul.addr %s440, 8
        %s442 = scalar_lea.vmem %s2, %s441
      $region44: #{mixed_loss.1} parent=39 // pred_fallthru
        _
    $region40: #{mixed_loss.1} parent=5 // pred_fallthru
      _
  $region6: #{mixed_loss.1} parent=0 // loop_footer
    %s12 = sadd.s32 1, %s8
  $region7: #{mixed_loss.1} parent=0 // loop_footer_branch
    %7 = sbr.rel target = $region3
  $region8: #{mixed_loss.1} parent=0 // loop_exit
    _

</llo_original>
